<compile_context>
chip_gen: v7x
topology: tpu7x:2x2x1
jax: 0.10.0
libtpu: 0.0.40
codegen_flags: <defaults>
</compile_context>

<pallas_src>
import functools

import jax
import jax.numpy as jnp
from jax.experimental import pallas as pl
from jax.experimental.pallas import tpu as pltpu

UPPER = 0.9
LOWER = 0.1
LMDA = 0.5

_LANES = 128                  # lane width of the flattened slab (fully lane-dense)
_TILE_TARGET_BYTES = 2 << 20  # per input tile buffer (x2 double-buffered)


def _round_up(x, m):
    return ((x + m - 1) // m) * m


def _choose_tile_rows(n_rows, itemsize):
    """n_rows >= 8 guaranteed by the wrapper; returns a multiple of 8 <= n_rows."""
    max_rows = max(8, (_TILE_TARGET_BYTES // (_LANES * itemsize)) // 8 * 8)
    return min(max_rows, (n_rows // 8) * 8)


def _neg_margin_sum_kernel(x_ref, partial_ref, *, valid_rows, tile_rows):
    """Sums relu(x - LOWER)^2 over one (tile_rows, 128) lane-dense tile."""
    x = x_ref[...].astype(jnp.float32)          # bf16/f32 in, f32 math + accumulate
    right = jnp.maximum(x - LOWER, 0.0)
    contrib = right * right
    if valid_rows is not None:
        # Partial last tile: mask rows past the end of the flattened slab.
        row = (jax.lax.broadcasted_iota(jnp.int32, x.shape, 0)
               + pl.program_id(0) * tile_rows)
        contrib = jnp.where(row < valid_rows, contrib, 0.0)
    # Hierarchical reduction, kept 2D: accumulate across row tiles first, then a
    # single small cross-lane reduce (XLU work stays off the critical path).
    col = jnp.sum(contrib, axis=0, keepdims=True)     # (1, 128)
    partial = jnp.sum(col, axis=1, keepdims=True)     # (1, 1)
    partial_ref[0, 0] = partial[0, 0]


def capsule_loss(logits, labels):
    """logits: (B, C) float32/bfloat16; labels: (B,) int class ids -> scalar f32."""
    B, C = logits.shape
    labels = labels.astype(jnp.int32)
    N = B * C

    # ---- bulk negative-margin term: sum_{b,c} relu(logits - LOWER)^2 ----------
    flat = logits.reshape(-1)                    # free (row-major contiguous)
    if N % _LANES != 0 or N // _LANES < 8:
        # Only case that materializes a padded copy; zeros contribute exactly 0
        # to relu(x - 0.1)^2, so the result is unchanged.
        n_pad = _round_up(max(N, 8 * _LANES), 8 * _LANES)
        flat = jnp.pad(flat, (0, n_pad - N))
    rows = flat.shape[0] // _LANES
    x2d = flat.reshape(rows, _LANES)             # free (row-major contiguous)

    tile_rows = _choose_tile_rows(rows, x2d.dtype.itemsize)
    num_tiles = pl.cdiv(rows, tile_rows)
    needs_row_mask = (num_tiles * tile_rows != rows)

    kernel = functools.partial(
        _neg_margin_sum_kernel,
        valid_rows=rows if needs_row_mask else None,
        tile_rows=tile_rows,
    )

    partials = pl.pallas_call(
        kernel,
        out_shape=jax.ShapeDtypeStruct((num_tiles, 1), jnp.float32),
        grid=(num_tiles,),
        in_specs=[pl.BlockSpec((tile_rows, _LANES), lambda i: (i, 0))],
        out_specs=pl.BlockSpec((1, 1), lambda i: (i, 0), memory_space=pltpu.SMEM),
        compiler_params=pltpu.CompilerParams(dimension_semantics=("parallel",)),
    )(x2d)
    bulk_right_sq = jnp.sum(partials)            # tiny (num_tiles,) reduction

    # ---- tiny label-dependent correction (B gathered elements, plain JAX) -----
    x_lab = jnp.take_along_axis(logits, labels[:, None], axis=1).astype(jnp.float32)
    left = jnp.maximum(UPPER - x_lab, 0.0)
    right = jnp.maximum(x_lab - LOWER, 0.0)
    correction = jnp.sum(left * left - LMDA * (right * right))

    return (LMDA * bulk_right_sq + correction) / B


def capsule_loss_ref(logits, labels):
    # pure-JAX reference for correctness checking
    C = logits.shape[1]
    onehot = jax.nn.one_hot(labels, C, dtype=jnp.float32)
    left = jnp.maximum(UPPER - logits, 0.0) ** 2
    right = jnp.maximum(logits - LOWER, 0.0) ** 2
    return (jnp.sum(onehot * left, -1).mean()
            + LMDA * jnp.sum((1.0 - onehot) * right, -1).mean())


if __name__ == "__main__":
    key = jax.random.PRNGKey(0)
    k1, k2, k3, k4 = jax.random.split(key, 4)

    # Small shape consistent with the module (capsule lengths in [0, 1)).
    B, C = 8, 10
    logits = jax.random.uniform(k1, (B, C), dtype=jnp.float32)
    labels = jax.random.randint(k2, (B,), 0, C, dtype=jnp.int32)

    loss = capsule_loss(logits, labels)
    jax.block_until_ready(loss)
    ref = capsule_loss_ref(logits, labels)
    assert jnp.allclose(loss, ref, atol=1e-5, rtol=1e-5), (loss, ref)

    # Larger bf16 case exercising the flattened lane-dense path and in-kernel upcast.
    B2, C2 = 1000, 10
    logits2 = jax.random.uniform(k3, (B2, C2), dtype=jnp.float32).astype(jnp.bfloat16)
    labels2 = jax.random.randint(k4, (B2,), 0, C2, dtype=jnp.int32)
    loss2 = capsule_loss(logits2, labels2)
    jax.block_until_ready(loss2)
    ref2 = capsule_loss_ref(logits2.astype(jnp.float32), labels2)
    assert jnp.allclose(loss2, ref2, atol=1e-4, rtol=1e-4), (loss2, ref2)

    print("KERNEL_OK")
</pallas_src>

<mosaic_0001>
module attributes {stable_mosaic.version = 11 : i64} {
  func.func @_neg_margin_sum_kernel(%arg0: i32, %arg1: memref<8x128xf32, #tpu.memory_space<vmem>>, %arg2: memref<1x1xf32, #tpu.memory_space<smem>>) attributes {dimension_semantics = [#tpu.dimension_semantics<parallel>], iteration_bounds = array<i64: 1>, scalar_prefetch = 0 : i64, scratch_operands = 0 : i64, tpu.core_type = #tpu.core_type<tc>, window_params = [{transform_indices = @transform_0, window_bounds = array<i64: 8, 128>}, {transform_indices = @transform_1, window_bounds = array<i64: 1, 1>}]} {
    %c0 = arith.constant 0 : index
    %c0_0 = arith.constant 0 : index
    %0 = vector.load %arg1[%c0, %c0_0] : memref<8x128xf32, #tpu.memory_space<vmem>>, vector<8x128xf32>
    %cst = arith.constant 1.000000e-01 : f32
    %1 = vector.broadcast %cst : f32 to vector<8x128xf32>
    %2 = arith.subf %0, %1 : vector<8x128xf32>
    %cst_1 = arith.constant 0.000000e+00 : f32
    %3 = vector.broadcast %cst_1 : f32 to vector<8x128xf32>
    %4 = arith.maximumf %2, %3 : vector<8x128xf32>
    %5 = arith.mulf %4, %4 : vector<8x128xf32>
    %cst_2 = arith.constant dense<0.000000e+00> : vector<128xf32>
    %6 = vector.multi_reduction <add>, %5, %cst_2 [0] : vector<8x128xf32> to vector<128xf32>
    %7 = vector.shape_cast %6 : vector<128xf32> to vector<1x128xf32>
    %cst_3 = arith.constant dense<0.000000e+00> : vector<1xf32>
    %8 = vector.multi_reduction <add>, %7, %cst_3 [1] : vector<1x128xf32> to vector<1xf32>
    %9 = vector.shape_cast %8 : vector<1xf32> to vector<1x1xf32>
    %10 = vector.extract %9[0, 0] : f32 from vector<1x1xf32>
    %c0_4 = arith.constant 0 : index
    %c0_5 = arith.constant 0 : index
    %11 = memref.load %arg2[%c0_4, %c0_5] : memref<1x1xf32, #tpu.memory_space<smem>>
    memref.store %10, %arg2[%c0_4, %c0_5] : memref<1x1xf32, #tpu.memory_space<smem>>
    return
  }
  func.func @transform_0(%arg0: i32) -> (i32, i32) {
    %c0_i32 = arith.constant 0 : i32
    %c0_i32_0 = arith.constant 0 : i32
    return %arg0, %c0_i32 : i32, i32
  }
  func.func @transform_1(%arg0: i32) -> (i32, i32) {
    %c0_i32 = arith.constant 0 : i32
    %c0_i32_0 = arith.constant 0 : i32
    return %arg0, %c0_i32 : i32, i32
  }
}

</mosaic_0001>

<llo_original>
// kernel: tpu_custom_call.1
$region0: #{tpu_custom_call.1}
  #allocation0 [shape = 'u32[]', space=smem, size = 0x4, offset = 0x4, fixed_abs, tag = 'smem constant byte address 0x4 - core index']
  #allocation1 [shape = 'u32[144,128]{1,0:T(1,128)}', space=vmem, size = 0x12000, scoped, tag = 'internal scratch']
  %s0 = inlined_call_operand.hbm [shape: f32[8,128], index: 0, kind: input, shape index: {}]
  %s1 = inlined_call_operand.hbm [shape: f32[1,1], index: 1, kind: output, shape index: {}]
  %s2 = sld [smem:[#allocation0]]
  $region18: #{tpu_custom_call.1} parent=0
    _
  %s4 = ssub.s32 1, %s2
  %s5 = scalar_select 0, %s4, %s2
  $region1: #{tpu_custom_call.1} parent=0
    #allocation2 [shape = 'u8[4096]{0}', space=vmem, size = 0x1000, scoped, tag = 'input window, operand 0, single buffered']
    #allocation3 [shape = 's32[1]{0}', space=sflag, size = 0x4, scoped, tag = 'scoped memory for tpu_custom_call.1']
    #allocation4 [shape = 's32[1]{0}', space=sflag, size = 0x4, scoped, tag = 'scoped memory for tpu_custom_call.1']
    #allocation5 [shape = 'u8[512]{0}', space=smem, size = 0x200, scoped, tag = 'output window, operand 0, single buffered']
    %6 = vsyncpa [#allocation3], 0
    %7 = vsyncpa [#allocation4], 0
    // Predicated region
    $region2: #{tpu_custom_call.1} parent=1 // pred_check
      _
    $region3: #{tpu_custom_call.1} parent=1 // pred_check_branch
      %9 = sbr.rel (0) target = $region5
    $region4: #{tpu_custom_call.1} parent=1 // pred_region
      %s11 = ssub.s32 128, 128
      %12 = vsyncadd [#allocation3], %s11
      %s14 = sshll.u32 [#allocation2], 4
      %s15 = int_to_ptr.vmem [resolvable:$true] %s14
      %17 = dma.hbm_to_vmem [thread:$0]  %s0, 128, %s15, [#allocation3]
    $region5: #{tpu_custom_call.1} parent=1 // pred_fallthru
      _
    // Predicated region
    $region6: #{tpu_custom_call.1} parent=1 // pred_check
      _
    $region7: #{tpu_custom_call.1} parent=1 // pred_check_branch
      %19 = sbr.rel (0) target = $region9
    $region8: #{tpu_custom_call.1} parent=1 // pred_region
      %20 = dma.done [#allocation3], 128
    $region9: #{tpu_custom_call.1} parent=1 // pred_fallthru
      _
    %v21 = vld [vmem:[#allocation2] sm:$0xff]
    %v22 = vsub.f32 %v21, 0.1
    %v23 = vmax.f32 %v22, 0.0
    %v24 = vmul.f32 %v23, %v23
    %v25 = vrot.slane %v24, 4
    %v26 = vadd.f32 %v24, %v25
    %v27 = vrot.slane %v26, 2
    %v28 = vadd.f32 %v26, %v27
    %v29 = vrot.slane %v28, 1
    %v30 = vadd.f32 %v28, %v29
    %31 = vadd.xlane.f32.xlu0 %v30
    %v32 = vpop.xlane.xlu0 %31
    %s33 = vtos %v32
    %s34 = scalar_lea.smem [#allocation5], 0
    %35 = sst [smem:[%s34]] %s33
    // Predicated region
    $region10: #{tpu_custom_call.1} parent=1 // pred_check
      _
    $region11: #{tpu_custom_call.1} parent=1 // pred_check_branch
      %37 = sbr.rel (0) target = $region13
    $region12: #{tpu_custom_call.1} parent=1 // pred_region
      %s39 = ssub.s32 16, 16
      %40 = vsyncadd [#allocation4], %s39
      %43 = dma.smem_to_hbm [#allocation5], 16, %s1, [#allocation4]
    $region13: #{tpu_custom_call.1} parent=1 // pred_fallthru
      _
    // Predicated region
    $region14: #{tpu_custom_call.1} parent=1 // pred_check
      _
    $region15: #{tpu_custom_call.1} parent=1 // pred_check_branch
      %45 = sbr.rel (0) target = $region17
    $region16: #{tpu_custom_call.1} parent=1 // pred_region
      %46 = dma.done [#allocation4], 16
    $region17: #{tpu_custom_call.1} parent=1 // pred_fallthru
      _
    %47 = sfence
    %48 = vsyncpa [#allocation3], 1
    %49 = vsyncpa [#allocation4], 1

</llo_original>
